<compile_context>
chip_gen: v7x
topology: tpu7x:2x2x1
jax: 0.10.0
libtpu: 0.0.40
codegen_flags: <defaults>
</compile_context>

<pallas_src>
from functools import partial

import jax
import jax.numpy as jnp
from jax import lax
from jax.experimental import pallas as pl
from jax.experimental.pallas import tpu as pltpu


def _round_up(x, m):
    return ((x + m - 1) // m) * m


def _linear_kernel(x_ref, w_ref, b_ref, o_ref, *, K, tk, nk, x_resident):
    """One (tn, tk) W tile:  o[1, tn] += x[1, tk] . W[tn, tk]^T  (f32 acc)."""
    k = pl.program_id(1)

    # The output block index (0, j) is constant along the k (reduction) axis,
    # so o_ref stays VMEM-resident across k and doubles as the accumulator.
    @pl.when(k == 0)
    def _init():
        o_ref[...] = jnp.zeros_like(o_ref)

    if x_resident:
        start = pl.multiple_of(k * tk, 128)
        x = x_ref[:, pl.ds(start, tk)]
    else:
        x = x_ref[...]
    x = x.astype(w_ref.dtype)

    w = w_ref[...]
    rem = K % tk  # Python int at trace time: no masking code when K is aligned
    if rem != 0:
        # Ragged K tail: the out-of-bounds columns of the last W block hold
        # unspecified VMEM contents (possibly NaN) -> zero them before the dot.
        col = lax.broadcasted_iota(jnp.int32, (1, tk), 1)
        limit = jnp.where(k == nk - 1, rem, tk)
        w = jnp.where(col < limit, w, jnp.zeros_like(w))

    # Transposed-RHS contraction (q @ k.T style); lowered by Mosaic without an
    # explicit XLU transpose of the (tn, tk) W tile.
    o_ref[...] += lax.dot_general(
        x, w,
        dimension_numbers=(((1,), (1,)), ((), ())),
        preferred_element_type=jnp.float32)

    @pl.when(k == nk - 1)
    def _finish():
        o_ref[...] += b_ref[...]


def link_embedding_forward(inputs, W, b, *, tn_cap=1024, tk_cap=4096,
                           w_tile_bytes=8 << 20,
                           min_pallas_w_bytes=64 << 10):
    """out = inputs.flatten() @ W.T + b  (W: (N, K) torch layout, b: (N,)).

    Returns an (N,) float32 vector.  W is streamed in its own dtype."""
    N, K = W.shape
    x = inputs.reshape(1, K)
    itemsize = W.dtype.itemsize

    # Small-problem fast path: pallas_call launch overhead dominates a tiny
    # weight stream; let XLA fuse it.
    if N * K * itemsize < min_pallas_w_bytes:
        xw = jnp.dot(x.astype(W.dtype), W.T, preferred_element_type=jnp.float32)
        return xw[0] + b.astype(jnp.float32)

    # ---- N (output / "parallel") tiling ------------------------------------
    if N < 256:
        tn = N                                   # single exact block
    else:
        # >= 2 blocks so both v7x TensorCores stream W; harmless on v5e/v6e.
        tn = max(128, min(tn_cap, _round_up(pl.cdiv(N, 2), 128)))
    nj = pl.cdiv(N, tn)

    # ---- K (reduction) tiling -----------------------------------------------
    # Cap each W tile at ~w_tile_bytes so 2x double-buffered tiles (+ x + out)
    # stay well under scoped VMEM on every generation (incl. v7x's 64 MiB).
    bytes_cap = max(128, (w_tile_bytes // max(tn * itemsize, 1)) // 128 * 128)
    eff_tk_cap = max(128, min(tk_cap, bytes_cap))
    tk = K if K <= eff_tk_cap else eff_tk_cap
    nk = pl.cdiv(K, tk)
    Kp = nk * tk

    # Only the tiny activation vector is padded; W is never copied/padded.
    if Kp != K:
        x = jnp.pad(x, ((0, 0), (0, Kp - K)))
    b_row = b.astype(jnp.float32).reshape(1, N)

    x_itemsize = x.dtype.itemsize
    x_resident = Kp * x_itemsize <= (4 << 20)
    if x_resident:
        x_spec = pl.BlockSpec((1, Kp), lambda j, k: (0, 0))   # fetched once
    else:
        x_spec = pl.BlockSpec((1, tk), lambda j, k: (0, k))

    vmem_need = (2 * tn * tk * itemsize                          # W dbl buffer
                 + 2 * (Kp if x_resident else tk) * x_itemsize   # activation
                 + 4 * tn * 4 + 4 * tn * 4)                      # bias + out
    vmem_limit = int(min(max(vmem_need + (16 << 20), 32 << 20), 48 << 20))

    kernel = partial(_linear_kernel, K=K, tk=tk, nk=nk, x_resident=x_resident)

    out = pl.pallas_call(
        kernel,
        out_shape=jax.ShapeDtypeStruct((1, N), jnp.float32),
        grid=(nj, nk),
        in_specs=[
            x_spec,
            pl.BlockSpec((tn, tk), lambda j, k: (j, k)),   # W tile, native layout
            pl.BlockSpec((1, tn), lambda j, k: (0, j)),    # bias slice
        ],
        out_specs=pl.BlockSpec((1, tn), lambda j, k: (0, j)),
        compiler_params=pltpu.CompilerParams(
            dimension_semantics=("parallel", "arbitrary"),
            vmem_limit_bytes=vmem_limit),
        cost_estimate=pl.CostEstimate(
            flops=2 * K * N,
            transcendentals=0,
            bytes_accessed=N * K * itemsize + Kp * x_itemsize + 2 * N * 4),
    )(x, W, b_row)
    return out[0]


if __name__ == "__main__":
    key = jax.random.PRNGKey(0)
    keys = jax.random.split(key, 9)

    def ref_forward(inputs, W, b):
        # Reference with the same (bf16-rounded) operands, f32 accumulation.
        x = inputs.reshape(-1).astype(W.dtype).astype(jnp.float32)
        return x @ W.astype(jnp.float32).T + b.astype(jnp.float32)

    def make_case(kx, kw, kb, n_views, input_size, w_dtype):
        K, N = n_views * input_size, input_size
        bound = 1.0 / (K ** 0.5)
        W = jax.random.uniform(kw, (N, K), jnp.float32,
                               minval=-bound, maxval=bound).astype(w_dtype)
        b = jax.random.uniform(kb, (N,), jnp.float32,
                               minval=-bound, maxval=bound)
        x = jax.random.normal(kx, (n_views, input_size), jnp.float32)
        return x, W, b

    # 1) Module-consistent small shapes: single tile, grid collapses to (1, 1).
    x1, W1, b1 = make_case(keys[0], keys[1], keys[2], 4, 128, jnp.bfloat16)
    out1 = jax.block_until_ready(link_embedding_forward(x1, W1, b1))
    assert out1.shape == (128,)
    assert jnp.allclose(out1, ref_forward(x1, W1, b1), atol=1e-3, rtol=1e-3), "t1"

    # 2) Tiled path: grid (2, 2) -> two parallel N blocks + K accumulation.
    x2, W2, b2 = make_case(keys[3], keys[4], keys[5], 4, 256, jnp.bfloat16)
    out2 = jax.block_until_ready(
        link_embedding_forward(x2, W2, b2, tk_cap=512))
    assert out2.shape == (256,)
    assert jnp.allclose(out2, ref_forward(x2, W2, b2), atol=1e-3, rtol=1e-3), "t2"

    # 3) Ragged shapes: partial boundary blocks in N and K + in-kernel K-tail
    #    mask, with no HBM-side padding of W.
    x3, W3, b3 = make_case(keys[6], keys[7], keys[8], 3, 320, jnp.bfloat16)
    out3 = jax.block_until_ready(
        link_embedding_forward(x3, W3, b3, tk_cap=512))
    assert out3.shape == (320,)
    assert jnp.allclose(out3, ref_forward(x3, W3, b3), atol=1e-3, rtol=1e-3), "t3"

    print("KERNEL_OK")
</pallas_src>

<mosaic_0001>
module attributes {stable_mosaic.version = 11 : i64} {
  func.func @_linear_kernel(%arg0: i32, %arg1: i32, %arg2: memref<1x512xf32, #tpu.memory_space<vmem>>, %arg3: memref<128x512xbf16, #tpu.memory_space<vmem>>, %arg4: memref<1x128xf32, #tpu.memory_space<vmem>>, %arg5: memref<1x128xf32, #tpu.memory_space<vmem>>) attributes {dimension_semantics = [#tpu.dimension_semantics<parallel>, #tpu.dimension_semantics<arbitrary>], iteration_bounds = array<i64: 1, 1>, scalar_prefetch = 0 : i64, scratch_operands = 0 : i64, tpu.core_type = #tpu.core_type<tc>, window_params = [{pipeline_mode = #tpu.pipeline_mode<synchronous>, transform_indices = @transform_0, window_bounds = array<i64: 1, 512>}, {transform_indices = @transform_1, window_bounds = array<i64: 128, 512>}, {transform_indices = @transform_2, window_bounds = array<i64: 1, 128>}, {transform_indices = @transform_3, window_bounds = array<i64: 1, 128>}]} {
    %c0_i32 = arith.constant 0 : i32
    %0 = arith.cmpi eq, %arg1, %c0_i32 : i32
    %1 = arith.extui %0 : i1 to i32
    %c0_i32_0 = arith.constant 0 : i32
    %2 = arith.cmpi ne, %1, %c0_i32_0 : i32
    scf.if %2 {
      %cst_9 = arith.constant 0.000000e+00 : f32
      %16 = vector.broadcast %cst_9 : f32 to vector<1x128xf32>
      %c0_10 = arith.constant 0 : index
      %c0_11 = arith.constant 0 : index
      %17 = vector.load %arg5[%c0_10, %c0_11] : memref<1x128xf32, #tpu.memory_space<vmem>>, vector<1x128xf32>
      tpu.vector_store %arg5[%c0_10, %c0_11], %16 {strides = array<i32>} : memref<1x128xf32, #tpu.memory_space<vmem>>, vector<1x128xf32>,
    } else {
    }
    %c512_i32 = arith.constant 512 : i32
    %3 = arith.muli %arg1, %c512_i32 : i32
    %4 = tpu.assume_multiple %3, 128 : i32
    %c0 = arith.constant 0 : index
    %5 = arith.index_cast %4 : i32 to index
    %6 = vector.load %arg2[%c0, %5] : memref<1x512xf32, #tpu.memory_space<vmem>>, vector<1x512xf32>
    %7 = arith.truncf %6 : vector<1x512xf32> to vector<1x512xbf16>
    %c0_1 = arith.constant 0 : index
    %c0_2 = arith.constant 0 : index
    %8 = vector.load %arg3[%c0_1, %c0_2] : memref<128x512xbf16, #tpu.memory_space<vmem>>, vector<128x512xbf16>
    %c0_3 = arith.constant 0 : index
    %c0_4 = arith.constant 0 : index
    %9 = vector.load %arg5[%c0_3, %c0_4] : memref<1x128xf32, #tpu.memory_space<vmem>>, vector<1x128xf32>
    %cst = arith.constant dense<0.000000e+00> : vector<1x128xf32>
    %10 = tpu.matmul %7, %8, %cst {dimension_numbers = #tpu.dot_dimension_numbers<[1], [1], [0], [0], [0, 0, 1, 0], [], []>} : vector<1x512xbf16>, vector<128x512xbf16>, vector<1x128xf32> -> vector<1x128xf32>
    %11 = arith.addf %9, %10 : vector<1x128xf32>
    %c0_5 = arith.constant 0 : index
    %c0_6 = arith.constant 0 : index
    %12 = vector.load %arg5[%c0_5, %c0_6] : memref<1x128xf32, #tpu.memory_space<vmem>>, vector<1x128xf32>
    tpu.vector_store %arg5[%c0_5, %c0_6], %11 {strides = array<i32>} : memref<1x128xf32, #tpu.memory_space<vmem>>, vector<1x128xf32>,
    %c0_i32_7 = arith.constant 0 : i32
    %13 = arith.cmpi eq, %arg1, %c0_i32_7 : i32
    %14 = arith.extui %13 : i1 to i32
    %c0_i32_8 = arith.constant 0 : i32
    %15 = arith.cmpi ne, %14, %c0_i32_8 : i32
    scf.if %15 {
      %c0_9 = arith.constant 0 : index
      %c0_10 = arith.constant 0 : index
      %16 = vector.load %arg5[%c0_9, %c0_10] : memref<1x128xf32, #tpu.memory_space<vmem>>, vector<1x128xf32>
      %c0_11 = arith.constant 0 : index
      %c0_12 = arith.constant 0 : index
      %17 = vector.load %arg4[%c0_11, %c0_12] : memref<1x128xf32, #tpu.memory_space<vmem>>, vector<1x128xf32>
      %18 = arith.addf %16, %17 : vector<1x128xf32>
      %c0_13 = arith.constant 0 : index
      %c0_14 = arith.constant 0 : index
      %19 = vector.load %arg5[%c0_13, %c0_14] : memref<1x128xf32, #tpu.memory_space<vmem>>, vector<1x128xf32>
      tpu.vector_store %arg5[%c0_13, %c0_14], %18 {strides = array<i32>} : memref<1x128xf32, #tpu.memory_space<vmem>>, vector<1x128xf32>,
    } else {
    }
    return
  }
  func.func @transform_0(%arg0: i32, %arg1: i32) -> (i32, i32) {
    %c0_i32 = arith.constant 0 : i32
    %c0_i32_0 = arith.constant 0 : i32
    %c0_i32_1 = arith.constant 0 : i32
    return %c0_i32, %c0_i32_0 : i32, i32
  }
  func.func @transform_1(%arg0: i32, %arg1: i32) -> (i32, i32) {
    %c0_i32 = arith.constant 0 : i32
    return %arg0, %arg1 : i32, i32
  }
  func.func @transform_2(%arg0: i32, %arg1: i32) -> (i32, i32) {
    %c0_i32 = arith.constant 0 : i32
    %c0_i32_0 = arith.constant 0 : i32
    return %c0_i32, %arg0 : i32, i32
  }
  func.func @transform_3(%arg0: i32, %arg1: i32) -> (i32, i32) {
    %c0_i32 = arith.constant 0 : i32
    %c0_i32_0 = arith.constant 0 : i32
    return %c0_i32, %arg0 : i32, i32
  }
}

</mosaic_0001>

<llo_original>
// kernel: tpu_custom_call.1
$region0: #{tpu_custom_call.1}
  #allocation0 [shape = 'u32[]', space=smem, size = 0x4, offset = 0x4, fixed_abs, tag = 'smem constant byte address 0x4 - core index']
  #allocation1 [shape = 'u32[144,128]{1,0:T(1,128)}', space=vmem, size = 0x12000, scoped, tag = 'internal scratch']
  %s0 = inlined_call_operand.hbm [shape: f32[1,512], index: 0, kind: input, shape index: {}]
  %s1 = inlined_call_operand.hbm [shape: bf16[128,512], index: 1, kind: input, shape index: {}]
  %s2 = inlined_call_operand.vmem [shape: f32[1,128], index: 2, kind: input, shape index: {}]
  %s3 = inlined_call_operand.hbm [shape: f32[1,128], index: 3, kind: output, shape index: {}]
  %s4 = sld [smem:[#allocation0]]
  $region38: #{tpu_custom_call.1} parent=0
    _
  %s6 = ssub.s32 1, %s4
  %s7 = scalar_select 0, %s6, %s4
  $region1: #{tpu_custom_call.1} parent=0
    #allocation2 [shape = 'u8[2048]{0}', space=vmem, size = 0x800, scoped, tag = 'input window, operand 0, single buffered']
    #allocation3 [shape = 's32[1]{0}', space=sflag, size = 0x4, scoped, tag = 'scoped memory for tpu_custom_call.1']
    #allocation4 [shape = 's32[1]{0}', space=sflag, size = 0x4, scoped, tag = 'scoped memory for tpu_custom_call.1']
    #allocation5 [shape = 'u8[131072]{0}', space=vmem, size = 0x20000, scoped, tag = 'input window, operand 1, single buffered']
    #allocation6 [shape = 's32[1]{0}', space=sflag, size = 0x4, scoped, tag = 'scoped memory for tpu_custom_call.1']
    #allocation7 [shape = 'u8[512]{0}', space=vmem, size = 0x400, scoped, tag = 'output window, operand 0, single buffered']
    %8 = vsyncpa [#allocation3], 0
    %9 = vsyncpa [#allocation6], 0
    %10 = vsyncpa [#allocation4], 0
    // Predicated region
    $region2: #{tpu_custom_call.1} parent=1 // pred_check
      _
    $region3: #{tpu_custom_call.1} parent=1 // pred_check_branch
      %12 = sbr.rel (0) target = $region5
    $region4: #{tpu_custom_call.1} parent=1 // pred_region
      %s14 = ssub.s32 64, 64
      %15 = vsyncadd [#allocation3], %s14
      %s17 = sshll.u32 [#allocation2], 4
      %s18 = int_to_ptr.vmem [resolvable:$true] %s17
      %20 = dma.hbm_to_vmem [thread:$0]  %s0, 64, %s18, [#allocation3]
    $region5: #{tpu_custom_call.1} parent=1 // pred_fallthru
      _
    // Predicated region
    $region6: #{tpu_custom_call.1} parent=1 // pred_check
      _
    $region7: #{tpu_custom_call.1} parent=1 // pred_check_branch
      %22 = sbr.rel (0) target = $region9
    $region8: #{tpu_custom_call.1} parent=1 // pred_region
      %s24 = ssub.s32 4096, 4096
      %25 = vsyncadd [#allocation6], %s24
      %s26 = sshll.u32 [#allocation5], 4
      %s27 = int_to_ptr.vmem [resolvable:$true] %s26
      %32 = dma.hbm_to_vmem [thread:$0]  %s1, 4096, %s27, [#allocation6], 256, 256, 16
    $region9: #{tpu_custom_call.1} parent=1 // pred_fallthru
      _
    // Predicated region
    $region10: #{tpu_custom_call.1} parent=1 // pred_check
      _
    $region11: #{tpu_custom_call.1} parent=1 // pred_check_branch
      %34 = sbr.rel (0) target = $region13
    $region12: #{tpu_custom_call.1} parent=1 // pred_region
      _
    $region13: #{tpu_custom_call.1} parent=1 // pred_fallthru
      _
    // Predicated region
    $region14: #{tpu_custom_call.1} parent=1 // pred_check
      _
    $region15: #{tpu_custom_call.1} parent=1 // pred_check_branch
      %36 = sbr.rel (0) target = $region17
    $region16: #{tpu_custom_call.1} parent=1 // pred_region
      %37 = dma.done [#allocation3], 64
    $region17: #{tpu_custom_call.1} parent=1 // pred_fallthru
      _
    // Predicated region
    $region18: #{tpu_custom_call.1} parent=1 // pred_check
      _
    $region19: #{tpu_custom_call.1} parent=1 // pred_check_branch
      %39 = sbr.rel (0) target = $region21
    $region20: #{tpu_custom_call.1} parent=1 // pred_region
      %40 = dma.done [#allocation6], 4096
    $region21: #{tpu_custom_call.1} parent=1 // pred_fallthru
      _
    %p42 = scmp.eq.s32.totalorder 0, 0
    // Predicated region
    $region22: #{tpu_custom_call.1} parent=1 // pred_check
      %p43 = pneg %p42
    $region23: #{tpu_custom_call.1} parent=1 // pred_check_branch
      %45 = sbr.rel (%p43) target = $region25
    $region24: #{tpu_custom_call.1} parent=1 // pred_region
      %46 = vst [vmem:[#allocation7] sm:$0x1] 0.0
    $region25: #{tpu_custom_call.1} parent=1 // pred_fallthru
      _
    %s47 = smul.u32 0, 512
    %s48 = sshra.s32 %s47, 7
    %s49 = sand.u32 %s47, 127
    %s50 = scalar_lea.vmem [#allocation2], %s48
    %v51 = vld [vmem:[%s50] sm:$0xf]
    %v53 = vlaneseq
    %v54 = vshrl.u32 %v53, 7
    %v55 = vsub.s32 0, %v54
    %v56 = vrot.slane %v51, %v55
    %v57 = vlaneseq
    %v58 = vshrl.u32 %v57, 7
    %v59 = vsub.s32 1, %v58
    %v60 = vrot.slane %v51, %v59
    %v61 = vlaneseq
    %v62 = vshrl.u32 %v61, 7
    %v63 = vsub.s32 2, %v62
    %v64 = vrot.slane %v51, %v63
    %v65 = vlaneseq
    %v66 = vshrl.u32 %v65, 7
    %v67 = vsub.s32 3, %v66
    %v68 = vrot.slane %v51, %v67
    %v73 = vpack.c.bf16 %v56, %v56
    %v74 = vpack.c.bf16 %v60, %v60
    %v75 = vpack.c.bf16 %v64, %v64
    %v76 = vpack.c.bf16 %v68, %v68
    %v77 = vld [vmem:[#allocation5] sm:$0xff]
    %v78 = vld [vmem:[#allocation5 + $0x8] sm:$0xff]
    %v79 = vld [vmem:[#allocation5 + $0x10] sm:$0xff]
    %v80 = vld [vmem:[#allocation5 + $0x18] sm:$0xff]
    %v81 = vld [vmem:[#allocation5 + $0x20] sm:$0xff]
    %v82 = vld [vmem:[#allocation5 + $0x28] sm:$0xff]
    %v83 = vld [vmem:[#allocation5 + $0x30] sm:$0xff]
    %v84 = vld [vmem:[#allocation5 + $0x38] sm:$0xff]
    %v85 = vld [vmem:[#allocation5 + $0x40] sm:$0xff]
    %v86 = vld [vmem:[#allocation5 + $0x48] sm:$0xff]
    %v87 = vld [vmem:[#allocation5 + $0x50] sm:$0xff]
    %v88 = vld [vmem:[#allocation5 + $0x58] sm:$0xff]
    %v89 = vld [vmem:[#allocation5 + $0x60] sm:$0xff]
    %v90 = vld [vmem:[#allocation5 + $0x68] sm:$0xff]
    %v91 = vld [vmem:[#allocation5 + $0x70] sm:$0xff]
    %v92 = vld [vmem:[#allocation5 + $0x78] sm:$0xff]
    %v93 = vld [vmem:[#allocation5 + $0x80] sm:$0xff]
    %v94 = vld [vmem:[#allocation5 + $0x88] sm:$0xff]
    %v95 = vld [vmem:[#allocation5 + $0x90] sm:$0xff]
    %v96 = vld [vmem:[#allocation5 + $0x98] sm:$0xff]
    %v97 = vld [vmem:[#allocation5 + $0xa0] sm:$0xff]
    %v98 = vld [vmem:[#allocation5 + $0xa8] sm:$0xff]
    %v99 = vld [vmem:[#allocation5 + $0xb0] sm:$0xff]
    %v100 = vld [vmem:[#allocation5 + $0xb8] sm:$0xff]
    %v101 = vld [vmem:[#allocation5 + $0xc0] sm:$0xff]
    %v102 = vld [vmem:[#allocation5 + $0xc8] sm:$0xff]
    %v103 = vld [vmem:[#allocation5 + $0xd0] sm:$0xff]
    %v104 = vld [vmem:[#allocation5 + $0xd8] sm:$0xff]
    %v105 = vld [vmem:[#allocation5 + $0xe0] sm:$0xff]
    %v106 = vld [vmem:[#allocation5 + $0xe8] sm:$0xff]
    %v107 = vld [vmem:[#allocation5 + $0xf0] sm:$0xff]
    %v108 = vld [vmem:[#allocation5 + $0xf8] sm:$0xff]
    %v109 = vld [vmem:[#allocation7] sm:$0x1]
    %v142 = vunpack.c.l.b16 %v77
    %v143 = vunpack.c.h.b16 %v77
    %v144 = vunpack.c.l.b16 %v78
    %v145 = vunpack.c.h.b16 %v78
    %v146 = vunpack.c.l.b16 %v79
    %v147 = vunpack.c.h.b16 %v79
    %v148 = vunpack.c.l.b16 %v80
    %v149 = vunpack.c.h.b16 %v80
    %v150 = vunpack.c.l.b16 %v81
    %v151 = vunpack.c.h.b16 %v81
    %v152 = vunpack.c.l.b16 %v82
    %v153 = vunpack.c.h.b16 %v82
    %v154 = vunpack.c.l.b16 %v83
    %v155 = vunpack.c.h.b16 %v83
    %v156 = vunpack.c.l.b16 %v84
    %v157 = vunpack.c.h.b16 %v84
    %v158 = vunpack.c.l.b16 %v85
    %v159 = vunpack.c.h.b16 %v85
    %v160 = vunpack.c.l.b16 %v86
    %v161 = vunpack.c.h.b16 %v86
    %v162 = vunpack.c.l.b16 %v87
    %v163 = vunpack.c.h.b16 %v87
    %v164 = vunpack.c.l.b16 %v88
    %v165 = vunpack.c.h.b16 %v88
    %v166 = vunpack.c.l.b16 %v89
    %v167 = vunpack.c.h.b16 %v89
    %v168 = vunpack.c.l.b16 %v90
    %v169 = vunpack.c.h.b16 %v90
    %v170 = vunpack.c.l.b16 %v91
    %v171 = vunpack.c.h.b16 %v91
    %v172 = vunpack.c.l.b16 %v92
    %v173 = vunpack.c.h.b16 %v92
    %v174 = vunpack.c.l.b16 %v93
    %v175 = vunpack.c.h.b16 %v93
    %v176 = vunpack.c.l.b16 %v94
    %v177 = vunpack.c.h.b16 %v94
    %v178 = vunpack.c.l.b16 %v95
    %v179 = vunpack.c.h.b16 %v95
    %v180 = vunpack.c.l.b16 %v96
    %v181 = vunpack.c.h.b16 %v96
    %v182 = vunpack.c.l.b16 %v97
    %v183 = vunpack.c.h.b16 %v97
    %v184 = vunpack.c.l.b16 %v98
    %v185 = vunpack.c.h.b16 %v98
    %v186 = vunpack.c.l.b16 %v99
    %v187 = vunpack.c.h.b16 %v99
    %v188 = vunpack.c.l.b16 %v100
    %v189 = vunpack.c.h.b16 %v100
    %v190 = vunpack.c.l.b16 %v101
    %v191 = vunpack.c.h.b16 %v101
    %v192 = vunpack.c.l.b16 %v102
    %v193 = vunpack.c.h.b16 %v102
    %v194 = vunpack.c.l.b16 %v103
    %v195 = vunpack.c.h.b16 %v103
    %v196 = vunpack.c.l.b16 %v104
    %v197 = vunpack.c.h.b16 %v104
    %v198 = vunpack.c.l.b16 %v105
    %v199 = vunpack.c.h.b16 %v105
    %v200 = vunpack.c.l.b16 %v106
    %v201 = vunpack.c.h.b16 %v106
    %v202 = vunpack.c.l.b16 %v107
    %v203 = vunpack.c.h.b16 %v107
    %v204 = vunpack.c.l.b16 %v108
    %v205 = vunpack.c.h.b16 %v108
    %v206 = vpack.c.b16 %v146, %v142
    %v207 = vpack.c.b16 %v147, %v143
    %v208 = vpack.c.b16 %v148, %v144
    %v209 = vpack.c.b16 %v149, %v145
    %v210 = vpack.c.b16 %v154, %v150
    %v211 = vpack.c.b16 %v155, %v151
    %v212 = vpack.c.b16 %v156, %v152
    %v213 = vpack.c.b16 %v157, %v153
    %v214 = vpack.c.b16 %v162, %v158
    %v215 = vpack.c.b16 %v163, %v159
    %v216 = vpack.c.b16 %v164, %v160
    %v217 = vpack.c.b16 %v165, %v161
    %v218 = vpack.c.b16 %v170, %v166
    %v219 = vpack.c.b16 %v171, %v167
    %v220 = vpack.c.b16 %v172, %v168
    %v221 = vpack.c.b16 %v173, %v169
    %v222 = vpack.c.b16 %v178, %v174
    %v223 = vpack.c.b16 %v179, %v175
    %v224 = vpack.c.b16 %v180, %v176
    %v225 = vpack.c.b16 %v181, %v177
    %v226 = vpack.c.b16 %v186, %v182
    %v227 = vpack.c.b16 %v187, %v183
    %v228 = vpack.c.b16 %v188, %v184
    %v229 = vpack.c.b16 %v189, %v185
    %v230 = vpack.c.b16 %v194, %v190
    %v231 = vpack.c.b16 %v195, %v191
    %v232 = vpack.c.b16 %v196, %v192
    %v233 = vpack.c.b16 %v197, %v193
    %v234 = vpack.c.b16 %v202, %v198
    %v235 = vpack.c.b16 %v203, %v199
    %v236 = vpack.c.b16 %v204, %v200
    %v237 = vpack.c.b16 %v205, %v201
    %270 = vmatprep.subr.bf16.mxu0 %v207
    %271 = vmatpush1.bf16.xpose.msra.mxu0 %v206
    %272 = vmatprep.subr.bf16.mxu0 %v211
    %273 = vmatpush1.bf16.xpose.msra.mxu0 %v210
    %274 = vmatprep.subr.bf16.mxu0 %v215
    %275 = vmatpush1.bf16.xpose.msra.mxu0 %v214
    %276 = vmatprep.subr.bf16.mxu0 %v219
    %277 = vmatpush1.bf16.xpose.msra.mxu0 %v218
    %278 = vmatprep.subr.bf16.mxu0 %v223
    %279 = vmatpush1.bf16.xpose.msra.mxu0 %v222
    %280 = vmatprep.subr.bf16.mxu0 %v227
    %281 = vmatpush1.bf16.xpose.msra.mxu0 %v226
    %282 = vmatprep.subr.bf16.mxu0 %v231
    %283 = vmatpush1.bf16.xpose.msra.mxu0 %v230
    %284 = vmatprep.subr.bf16.mxu0 %v235
    %285 = vmatpush1.bf16.xpose.msra.mxu0 %v234
    %286 = vmatprep.subr.bf16.mxu0 0
    %287 = vmatpush1.bf16.xpose.msra.mxu0 0
    %288 = vmatprep.subr.bf16.mxu0 0
    %289 = vmatpush1.bf16.xpose.msra.mxu0 0
    %290 = vmatprep.subr.bf16.mxu0 0
    %291 = vmatpush1.bf16.xpose.msra.mxu0 0
    %292 = vmatprep.subr.bf16.mxu0 0
    %293 = vmatpush1.bf16.xpose.msra.mxu0 0
    %294 = vmatprep.subr.bf16.mxu0 0
    %295 = vmatpush1.bf16.xpose.msra.mxu0 0
    %296 = vmatprep.subr.bf16.mxu0 0
    %297 = vmatpush1.bf16.xpose.msra.mxu0 0
    %298 = vmatprep.subr.bf16.mxu0 0
    %299 = vmatpush1.bf16.xpose.msra.mxu0 0
    %300 = vmatprep.subr.bf16.mxu0 0
    %301 = vmatpush1.bf16.xpose.msra.mxu0 0
    %302 = vmatprep.mubr.bf16.mxu0 %v74
    %303 = vmatmul.mubr.bf16.gmra.mrb[0].mxu0 %v73
    %v304 = vpop.f32.mrb[0].mxu0
    %v305 = vadd.f32 0.0, %v304
    %v306 = vpop.f32.mrb[0].mxu0
    %v307 = vpop.f32.mrb[0].mxu0
    %v308 = vpop.f32.mrb[0].mxu0
    %309 = vdwg.mxu0
    %310 = vmatprep.subr.bf16.mxu0 %v209
    %311 = vmatpush1.bf16.xpose.msra.mxu0 %v208
    %312 = vmatprep.subr.bf16.mxu0 %v213
    %313 = vmatpush1.bf16.xpose.msra.mxu0 %v212
    %314 = vmatprep.subr.bf16.mxu0 %v217
    %315 = vmatpush1.bf16.xpose.msra.mxu0 %v216
    %316 = vmatprep.subr.bf16.mxu0 %v221
    %317 = vmatpush1.bf16.xpose.msra.mxu0 %v220
    %318 = vmatprep.subr.bf16.mxu0 %v225
    %319 = vmatpush1.bf16.xpose.msra.mxu0 %v224
    %320 = vmatprep.subr.bf16.mxu0 %v229
    %321 = vmatpush1.bf16.xpose.msra.mxu0 %v228
    %322 = vmatprep.subr.bf16.mxu0 %v233
    %323 = vmatpush1.bf16.xpose.msra.mxu0 %v232
    %324 = vmatprep.subr.bf16.mxu0 %v237
    %325 = vmatpush1.bf16.xpose.msra.mxu0 %v236
    %326 = vmatprep.subr.bf16.mxu0 0
    %327 = vmatpush1.bf16.xpose.msra.mxu0 0
    %328 = vmatprep.subr.bf16.mxu0 0
    %329 = vmatpush1.bf16.xpose.msra.mxu0 0
    %330 = vmatprep.subr.bf16.mxu0 0
    %331 = vmatpush1.bf16.xpose.msra.mxu0 0
    %332 = vmatprep.subr.bf16.mxu0 0
    %333 = vmatpush1.bf16.xpose.msra.mxu0 0
    %334 = vmatprep.subr.bf16.mxu0 0
    %335 = vmatpush1.bf16.xpose.msra.mxu0 0
    %336 = vmatprep.subr.bf16.mxu0 0
    %337 = vmatpush1.bf16.xpose.msra.mxu0 0
    %338 = vmatprep.subr.bf16.mxu0 0
    %339 = vmatpush1.bf16.xpose.msra.mxu0 0
    %340 = vmatprep.subr.bf16.mxu0 0
    %341 = vmatpush1.bf16.xpose.msra.mxu0 0
    %342 = vmatprep.mubr.bf16.mxu0 %v76
    %343 = vmatmul.mubr.bf16.gmra.mrb[0].mxu0 %v75
    %v344 = vpop.f32.mrb[0].mxu0
    %v345 = vadd.f32 %v305, %v344
    %v346 = vpop.f32.mrb[0].mxu0
    %v347 = vpop.f32.mrb[0].mxu0
    %v348 = vpop.f32.mrb[0].mxu0
    %349 = vdwg.mxu0
    %v350 = vadd.f32 %v109, %v345
    %351 = vst [vmem:[#allocation7] sm:$0x1] %v350
    // Predicated region
    $region26: #{tpu_custom_call.1} parent=1 // pred_check
      %p352 = pneg %p42
    $region27: #{tpu_custom_call.1} parent=1 // pred_check_branch
      %354 = sbr.rel (%p352) target = $region29
    $region28: #{tpu_custom_call.1} parent=1 // pred_region
      %v355 = vld [vmem:[#allocation7] sm:$0x1]
      %v356 = vld [vmem:[%s2] sm:$0x1]
      %v357 = vadd.f32 %v355, %v356
      %358 = vst [vmem:[#allocation7] sm:$0x1] %v357
    $region29: #{tpu_custom_call.1} parent=1 // pred_fallthru
      _
    // Predicated region
    $region30: #{tpu_custom_call.1} parent=1 // pred_check
      _
    $region31: #{tpu_custom_call.1} parent=1 // pred_check_branch
      %360 = sbr.rel (0) target = $region33
    $region32: #{tpu_custom_call.1} parent=1 // pred_region
      %s362 = ssub.s32 16, 16
      %363 = vsyncadd [#allocation4], %s362
      %s365 = sshll.u32 [#allocation7], 4
      %s366 = int_to_ptr.vmem [resolvable:$true] %s365
      %368 = dma.vmem_to_hbm [thread:$0]  %s366, 16, %s3, [#allocation4]
    $region33: #{tpu_custom_call.1} parent=1 // pred_fallthru
      _
    // Predicated region
    $region34: #{tpu_custom_call.1} parent=1 // pred_check
      _
    $region35: #{tpu_custom_call.1} parent=1 // pred_check_branch
      %370 = sbr.rel (0) target = $region37
    $region36: #{tpu_custom_call.1} parent=1 // pred_region
      %371 = dma.done [#allocation4], 16
    $region37: #{tpu_custom_call.1} parent=1 // pred_fallthru
      _
    %372 = vsyncpa [#allocation3], 1
    %373 = vsyncpa [#allocation6], 1
    %374 = vsyncpa [#allocation4], 1

</llo_original>
